<compile_context>
chip_gen: v5e
topology: v5e:2x2
jax: 0.10.0
libtpu: 0.0.40
codegen_flags: <defaults>
</compile_context>

<pallas_src>
import functools

import jax
import jax.numpy as jnp
from jax.experimental import pallas as pl
from jax.experimental.pallas import tpu as pltpu


def _focal_loss_kernel(x_ref, t_ref, a_ref, out_ref, *, gamma, n_s, rem,
                       has_alpha):
    """One (batch n, S-tile s) grid step.

    x_ref  : (1, C, T) logits (any float dtype; widened to f32 here)
    t_ref  : (1, 1, T) int32 target class per example
    a_ref  : (1, C, 1) f32 per-class alpha (unused when has_alpha=False)
    out_ref: (1, 1, 1, 1) f32 partial loss sum for this tile
    """
    x = x_ref[...].astype(jnp.float32)                      # (1, C, T)
    t = t_ref[...]                                          # (1, 1, T)
    _, C, T = x.shape

    # log-softmax pieces over the class (sublane) axis
    m = jnp.max(x, axis=1, keepdims=True)                   # (1, 1, T)
    shifted = x - m                                         # (1, C, T)
    e = jnp.exp(shifted)                                    # EUP: C exps / lane
    sum_e = jnp.sum(e, axis=1, keepdims=True)               # (1, 1, T)

    # gather at the target class via a one-hot (no data-dependent indexing)
    cls = jax.lax.broadcasted_iota(jnp.int32, (1, C, T), 1)
    onehot = (cls == t).astype(jnp.float32)                 # (1, C, T)
    z_t = jnp.sum(onehot * shifted, axis=1, keepdims=True)  # shifted target logit
    e_t = jnp.sum(onehot * e, axis=1, keepdims=True)        # exp(shifted target)

    logpt = z_t - jnp.log(sum_e)                            # (1, 1, T)
    # pt without a second exp: reuse e and an approximate EUP reciprocal.
    pt = e_t * pl.reciprocal(sum_e, approx=True)            # (1, 1, T)

    if has_alpha:
        at = jnp.sum(onehot * a_ref[...], axis=1, keepdims=True)
        logpt = logpt * at                                  # alpha applied AFTER pt

    one_m_pt = 1.0 - pt
    if gamma == 0:
        focal = jnp.ones_like(pt)
    elif float(gamma).is_integer():
        focal = one_m_pt ** int(gamma)                      # integer_pow: VPU muls
    else:
        focal = one_m_pt ** jnp.float32(gamma)              # general float path
    loss = -(focal * logpt)                                 # (1, 1, T)

    def _emit(v):
        out_ref[...] = jnp.sum(v, axis=-1, keepdims=True).reshape(1, 1, 1, 1)

    if rem:  # only the last S-tile is partial -> mask only there
        last = n_s - 1

        @pl.when(pl.program_id(1) == last)
        def _():
            lane = jax.lax.broadcasted_iota(jnp.int32, loss.shape, 2)
            _emit(jnp.where(lane < rem, loss, 0.0))

        @pl.when(pl.program_id(1) != last)
        def _():
            _emit(loss)
    else:
        _emit(loss)


def focal_loss(inputs, targets, alpha=None, gamma=2, size_average=True,
               max_lane_tile=256 * 1024):
    """FocalLoss.forward.  inputs: (N, C) or (N, C, *spatial) float logits,
    targets: matching integer class indices.  Returns a scalar f32 loss."""
    if inputs.ndim > 2:
        N, C = int(inputs.shape[0]), int(inputs.shape[1])
        x = inputs.reshape(N, C, -1)                        # free reshape, no copy
        t = targets.reshape(N, 1, -1).astype(jnp.int32)
    else:
        C = int(inputs.shape[1])
        # 2-D path: put the example axis on lanes (one small transpose).
        x = jnp.transpose(inputs, (1, 0))[None]             # (1, C, N_examples)
        t = targets.reshape(1, 1, -1).astype(jnp.int32)
        N = 1
    S = int(x.shape[2])
    M = N * S                                               # total examples

    # ---- alpha handling (mirrors the module's __init__) --------------------
    if alpha is None:
        has_alpha = False
        alpha_vec = jnp.ones((C,), jnp.float32)
    elif isinstance(alpha, (float, int)) and not isinstance(alpha, bool):
        if C != 2:
            raise ValueError("scalar alpha builds [alpha, 1-alpha]; needs C == 2")
        has_alpha = True
        alpha_vec = jnp.array([alpha, 1.0 - alpha], jnp.float32)
    else:
        has_alpha = True
        alpha_vec = jnp.asarray(alpha, jnp.float32).reshape(-1)
    a = alpha_vec.reshape(1, C, 1)

    # ---- lane-tile choice: as big as a cross-generation VMEM budget allows --
    x_item = jnp.dtype(x.dtype).itemsize
    per_lane_db = 2 * (C * x_item + 4)                      # double-buffered x + i32 t
    budget = 20 << 20                                       # safe on v5e/v6e/v7x
    cap = max(128, (budget // per_lane_db) // 128 * 128)
    want = max(128, (int(max_lane_tile) // 128) * 128)
    full = pl.cdiv(S, 128) * 128
    tile = int(min(full, want, cap))
    n_s = pl.cdiv(S, tile)
    rem = S % tile                                          # 0 -> every tile is full

    block_bytes = C * tile * x_item + tile * 4
    vmem_limit = int(min(max(2 * block_bytes + (2 << 20), 32 << 20), 60 << 20))

    partials = pl.pallas_call(
        functools.partial(_focal_loss_kernel, gamma=gamma, n_s=n_s, rem=rem,
                          has_alpha=has_alpha),
        out_shape=jax.ShapeDtypeStruct((N, n_s, 1, 1), jnp.float32),
        grid_spec=pltpu.PrefetchScalarGridSpec(
            num_scalar_prefetch=0,
            grid=(N, n_s),
            in_specs=[
                pl.BlockSpec((1, C, tile), lambda n, s: (n, 0, s)),
                pl.BlockSpec((1, 1, tile), lambda n, s: (n, 0, s)),
                pl.BlockSpec((1, C, 1), lambda n, s: (0, 0, 0)),
            ],
            out_specs=pl.BlockSpec((1, 1, 1, 1), lambda n, s: (n, s, 0, 0)),
        ),
        compiler_params=pltpu.CompilerParams(
            dimension_semantics=("parallel", "parallel"),
            vmem_limit_bytes=vmem_limit),
    )(x, t, a)

    total = jnp.sum(partials)                               # tiny (N * n_s) reduce
    if size_average:
        total = total / jnp.float32(M)
    return total


def focal_loss_reference(inputs, targets, alpha=None, gamma=2,
                         size_average=True):
    """Pure-JAX reference with identical semantics (for verification)."""
    inputs = inputs.astype(jnp.float32)
    if inputs.ndim > 2:
        N, C = inputs.shape[0], inputs.shape[1]
        x = jnp.transpose(inputs.reshape(N, C, -1), (0, 2, 1)).reshape(-1, C)
    else:
        C = inputs.shape[1]
        x = inputs.reshape(-1, C)
    t = targets.reshape(-1).astype(jnp.int32)

    logp = jax.nn.log_softmax(x, axis=1)
    logpt = jnp.take_along_axis(logp, t[:, None], axis=1)[:, 0]
    pt = jnp.exp(logpt)
    if alpha is not None:
        if isinstance(alpha, (float, int)):
            alpha_vec = jnp.array([alpha, 1.0 - alpha], jnp.float32)
        else:
            alpha_vec = jnp.asarray(alpha, jnp.float32)
        logpt = logpt * alpha_vec[t]
    loss = -((1.0 - pt) ** gamma) * logpt
    return loss.mean() if size_average else loss.sum()


if __name__ == "__main__":
    N, C, H, W = 2, 4, 16, 16
    k0, k1 = jax.random.split(jax.random.PRNGKey(0), 2)

    logits = jax.random.normal(k0, (N, C, H, W), jnp.float32)
    targets = jax.random.randint(k1, (N, H, W), 0, C, jnp.int32)
    alpha = [0.25, 0.30, 0.20, 0.25]

    # (1) alpha list, gamma=2, mean; small tile so the grid has multiple steps
    out1 = jax.block_until_ready(
        focal_loss(logits, targets, alpha=alpha, gamma=2, size_average=True,
                   max_lane_tile=128))
    ref1 = focal_loss_reference(logits, targets, alpha=alpha, gamma=2,
                                size_average=True)

    # (2) alpha=None, sum reduction, default (large) tile
    out2 = jax.block_until_ready(
        focal_loss(logits, targets, alpha=None, gamma=2, size_average=False))
    ref2 = focal_loss_reference(logits, targets, alpha=None, gamma=2,
                                size_average=False)

    # (3) bf16 logits fed straight through (no host f32 cast), mean
    logits_bf16 = logits.astype(jnp.bfloat16)
    out3 = jax.block_until_ready(
        focal_loss(logits_bf16, targets, alpha=alpha, gamma=2,
                   size_average=True))
    ref3 = focal_loss_reference(logits_bf16, targets, alpha=alpha, gamma=2,
                                size_average=True)

    # (4) 2-D input path, example count not a multiple of 128 (masked tail)
    k2, k3 = jax.random.split(jax.random.PRNGKey(1), 2)
    logits2d = jax.random.normal(k2, (200, C), jnp.float32)
    targets2d = jax.random.randint(k3, (200,), 0, C, jnp.int32)
    out4 = jax.block_until_ready(
        focal_loss(logits2d, targets2d, alpha=alpha, gamma=2,
                   size_average=True))
    ref4 = focal_loss_reference(logits2d, targets2d, alpha=alpha, gamma=2,
                                size_average=True)

    # approx EUP reciprocal for pt -> allow a small relative slack
    tol = dict(rtol=5e-3, atol=2e-3)
    for o, r in ((out1, ref1), (out2, ref2), (out3, ref3), (out4, ref4)):
        assert o.shape == ()
        assert jnp.allclose(o, r, **tol), (float(o), float(r))
    print("KERNEL_OK")
</pallas_src>

<mosaic_0001>
module attributes {stable_mosaic.version = 11 : i64} {
  func.func @_focal_loss_kernel(%arg0: i32, %arg1: i32, %arg2: memref<1x4x128xf32, #tpu.memory_space<vmem>>, %arg3: memref<1x1x128xi32, #tpu.memory_space<vmem>>, %arg4: memref<1x4x1xf32, #tpu.memory_space<vmem>>, %arg5: memref<1x1x1x1xf32, #tpu.memory_space<vmem>>) attributes {dimension_semantics = [#tpu.dimension_semantics<parallel>, #tpu.dimension_semantics<parallel>], iteration_bounds = array<i64: 2, 2>, scalar_prefetch = 0 : i64, scratch_operands = 0 : i64, tpu.core_type = #tpu.core_type<tc>, window_params = [{transform_indices = @transform_0, window_bounds = array<i64: 1, 4, 128>}, {transform_indices = @transform_1, window_bounds = array<i64: 1, 1, 128>}, {pipeline_mode = #tpu.pipeline_mode<synchronous>, transform_indices = @transform_2, window_bounds = array<i64: 1, 4, 1>}, {transform_indices = @transform_3, window_bounds = array<i64: 1, 1, 1, 1>}]} {
    %c0 = arith.constant 0 : index
    %c0_0 = arith.constant 0 : index
    %c0_1 = arith.constant 0 : index
    %0 = vector.load %arg2[%c0, %c0_0, %c0_1] : memref<1x4x128xf32, #tpu.memory_space<vmem>>, vector<1x4x128xf32>
    %c0_2 = arith.constant 0 : index
    %c0_3 = arith.constant 0 : index
    %c0_4 = arith.constant 0 : index
    %1 = vector.load %arg3[%c0_2, %c0_3, %c0_4] : memref<1x1x128xi32, #tpu.memory_space<vmem>>, vector<1x1x128xi32>
    %cst = arith.constant dense<0xFF800000> : vector<1x128xf32>
    %2 = vector.multi_reduction <maximumf>, %0, %cst [1] : vector<1x4x128xf32> to vector<1x128xf32>
    %3 = vector.shape_cast %2 : vector<1x128xf32> to vector<1x1x128xf32>
    %4 = vector.broadcast %3 : vector<1x1x128xf32> to vector<1x4x128xf32>
    %5 = arith.subf %0, %4 : vector<1x4x128xf32>
    %6 = math.exp %5 : vector<1x4x128xf32>
    %cst_5 = arith.constant dense<0.000000e+00> : vector<1x128xf32>
    %7 = vector.multi_reduction <add>, %6, %cst_5 [1] : vector<1x4x128xf32> to vector<1x128xf32>
    %8 = vector.shape_cast %7 : vector<1x128xf32> to vector<1x1x128xf32>
    %9 = tpu.iota {dimensions = array<i32: 1>} : vector<1x4x128xi32>
    %10 = vector.broadcast %1 : vector<1x1x128xi32> to vector<1x4x128xi32>
    %11 = arith.cmpi eq, %9, %10 : vector<1x4x128xi32>
    %12 = arith.extui %11 : vector<1x4x128xi1> to vector<1x4x128xi32>
    %13 = arith.sitofp %12 : vector<1x4x128xi32> to vector<1x4x128xf32>
    %14 = arith.mulf %13, %5 : vector<1x4x128xf32>
    %cst_6 = arith.constant dense<0.000000e+00> : vector<1x128xf32>
    %15 = vector.multi_reduction <add>, %14, %cst_6 [1] : vector<1x4x128xf32> to vector<1x128xf32>
    %16 = vector.shape_cast %15 : vector<1x128xf32> to vector<1x1x128xf32>
    %17 = arith.mulf %13, %6 : vector<1x4x128xf32>
    %cst_7 = arith.constant dense<0.000000e+00> : vector<1x128xf32>
    %18 = vector.multi_reduction <add>, %17, %cst_7 [1] : vector<1x4x128xf32> to vector<1x128xf32>
    %19 = vector.shape_cast %18 : vector<1x128xf32> to vector<1x1x128xf32>
    %20 = math.log %8 : vector<1x1x128xf32>
    %21 = arith.subf %16, %20 : vector<1x1x128xf32>
    %22 = tpu.reciprocal %8 {approx = true} : vector<1x1x128xf32> -> vector<1x1x128xf32>
    %23 = arith.mulf %19, %22 : vector<1x1x128xf32>
    %c0_8 = arith.constant 0 : index
    %c0_9 = arith.constant 0 : index
    %c0_10 = arith.constant 0 : index
    %24 = vector.load %arg4[%c0_8, %c0_9, %c0_10] : memref<1x4x1xf32, #tpu.memory_space<vmem>>, vector<1x4x1xf32>
    %25 = vector.broadcast %24 : vector<1x4x1xf32> to vector<1x4x128xf32>
    %26 = arith.mulf %13, %25 : vector<1x4x128xf32>
    %cst_11 = arith.constant dense<0.000000e+00> : vector<1x128xf32>
    %27 = vector.multi_reduction <add>, %26, %cst_11 [1] : vector<1x4x128xf32> to vector<1x128xf32>
    %28 = vector.shape_cast %27 : vector<1x128xf32> to vector<1x1x128xf32>
    %29 = arith.mulf %21, %28 : vector<1x1x128xf32>
    %cst_12 = arith.constant 1.000000e+00 : f32
    %30 = vector.broadcast %cst_12 : f32 to vector<1x1x128xf32>
    %31 = arith.subf %30, %23 : vector<1x1x128xf32>
    %32 = arith.mulf %31, %31 : vector<1x1x128xf32>
    %33 = arith.mulf %32, %29 : vector<1x1x128xf32>
    %cst_13 = arith.constant 0.000000e+00 : f32
    %34 = vector.broadcast %cst_13 : f32 to vector<1x1x128xf32>
    %35 = arith.subf %34, %33 : vector<1x1x128xf32>
    %cst_14 = arith.constant dense<0.000000e+00> : vector<1x1xf32>
    %36 = vector.multi_reduction <add>, %35, %cst_14 [2] : vector<1x1x128xf32> to vector<1x1xf32>
    %37 = vector.shape_cast %36 : vector<1x1xf32> to vector<1x1x1xf32>
    %38 = vector.shape_cast %37 : vector<1x1x1xf32> to vector<1x1x1x1xf32>
    %c0_15 = arith.constant 0 : index
    %c0_16 = arith.constant 0 : index
    %c0_17 = arith.constant 0 : index
    %c0_18 = arith.constant 0 : index
    %39 = vector.load %arg5[%c0_15, %c0_16, %c0_17, %c0_18] : memref<1x1x1x1xf32, #tpu.memory_space<vmem>>, vector<1x1x1x1xf32>
    tpu.vector_store %arg5[%c0_15, %c0_16, %c0_17, %c0_18], %38 {strides = array<i32>} : memref<1x1x1x1xf32, #tpu.memory_space<vmem>>, vector<1x1x1x1xf32>,
    return
  }
  func.func @transform_0(%arg0: i32, %arg1: i32) -> (i32, i32, i32) {
    %c0_i32 = arith.constant 0 : i32
    %c0_i32_0 = arith.constant 0 : i32
    return %arg0, %c0_i32, %arg1 : i32, i32, i32
  }
  func.func @transform_1(%arg0: i32, %arg1: i32) -> (i32, i32, i32) {
    %c0_i32 = arith.constant 0 : i32
    %c0_i32_0 = arith.constant 0 : i32
    return %arg0, %c0_i32, %arg1 : i32, i32, i32
  }
  func.func @transform_2(%arg0: i32, %arg1: i32) -> (i32, i32, i32) {
    %c0_i32 = arith.constant 0 : i32
    %c0_i32_0 = arith.constant 0 : i32
    %c0_i32_1 = arith.constant 0 : i32
    %c0_i32_2 = arith.constant 0 : i32
    return %c0_i32, %c0_i32_0, %c0_i32_1 : i32, i32, i32
  }
  func.func @transform_3(%arg0: i32, %arg1: i32) -> (i32, i32, i32, i32) {
    %c0_i32 = arith.constant 0 : i32
    %c0_i32_0 = arith.constant 0 : i32
    %c0_i32_1 = arith.constant 0 : i32
    return %arg0, %arg1, %c0_i32, %c0_i32_0 : i32, i32, i32, i32
  }
}

</mosaic_0001>

<llo_original>
// kernel: tpu_custom_call.1
$region0: #{tpu_custom_call.1}
  #allocation0 [shape = 'u32[]', space=smem, size = 0x4, offset = 0x4, fixed_abs, tag = 'smem constant byte address 0x4 - core index']
  #allocation1 [shape = 'u32[72,128]{1,0:T(1,128)}', space=vmem, size = 0x9000, scoped, tag = 'internal scratch']
  %s0 = inlined_call_operand.hbm [shape: f32[2,4,256], index: 0, kind: input, shape index: {}]
  %s1 = inlined_call_operand.vmem [shape: s32[2,1,256], index: 1, kind: input, shape index: {}]
  %s2 = inlined_call_operand.vmem [shape: f32[1,4,1], index: 2, kind: input, shape index: {}]
  %s3 = inlined_call_operand.vmem [shape: f32[2,2,1,1], index: 3, kind: output, shape index: {}]
  %s4 = sld [smem:[#allocation0]]
  $region49: #{tpu_custom_call.1} parent=0
    _
  %s6 = ssub.s32 1, %s4
  %s7 = scalar_select 0, %s6, %s4
  $region1: #{tpu_custom_call.1} parent=0
    #allocation2 [shape = 'u8[4096]{0}', space=vmem, size = 0x1000, scoped, tag = 'input window, operand 0']
    #allocation3 [shape = 's32[2]{0}', space=sflag, size = 0x8, scoped, tag = 'scoped memory for tpu_custom_call.1']
    %8 = vsyncpa [#allocation3], 0
    %s9 = scalar_lea.sflag [#allocation3], 1
    %10 = vsyncpa %s9, 0
    loop: start=0, step=1, limit=6
    $region2: #{tpu_custom_call.1} parent=1 // loop_pre_header
      _
    $region3: #{tpu_custom_call.1} parent=1 // loop_header
      %s12 = sphi 0, %s16
      %p13 = scmp.ge.s32.totalorder %s12, 6
      %s19 = sphi 0, %s31
      %s20 = sphi 0, %s27
      %s21 = sphi 0, %s19
      %s22 = sphi 0, %s20
      %s23 = sphi 0, %s21
      %s24 = sphi 0, %s22
      %s36 = sphi 0, %s38
      %s39 = sphi 0, %s36
      %s40 = sphi 0, %s39
      %s56 = sphi 0, %s40
      %s64 = sphi 0, %s66
      %s67 = sphi 0, %s64
      %s68 = sphi 0, %s67
      %s84 = sphi 0, %s68
      %s88 = sphi 0, %s88
      %s90 = sphi 0, %s88
      %s91 = sphi 0, %s90
      %s105 = sphi 0, %s91
      %s113 = sphi 0, %s115
      %s116 = sphi 0, %s113
      %s117 = sphi 0, %s116
      %s133 = sphi 0, %s117
    $region4: #{tpu_custom_call.1} parent=1 // loop_header_branch
      %15 = sbr.rel (%p13) target = $region8
    $region5: #{tpu_custom_call.1} parent=1 // loop_body
      %s17 = ssub.s32 %s12, 1
      %s18 = ssub.s32 %s12, 2
      %s25 = sadd.s32 1, %s20
      %p26 = scmp.ge.s32.totalorder %s25, 2
      %s27 = scalar_select %p26, 0, %s25
      %s28 = sadd.s32 1, %s19
      %s29 = scalar_select %p26, %s28, %s19
      %p30 = scmp.ge.s32.totalorder %s29, 2
      %s31 = scalar_select %p30, 0, %s29
      %s32 = ssub.s32 %s19, %s31
      %s33 = ssub.s32 %s20, %s27
      %s34 = sor.u32 %s32, %s33
      %p35 = scmp.eq.s32.totalorder %s34, 0
      %s37 = sadd.s32 %s36, 1
      %s38 = scalar_select %p35, %s36, %s37
      %p41 = pneg %p35
      %p42 = scmp.eq.s32.totalorder %s12, 3
      %p43 = por %p41, %p42
      %p44 = scmp.ne.s32.totalorder %s36, %s39
      %p45 = scmp.eq.s32.totalorder %s12, 0
      %p46 = por %p44, %p45
      %p47 = scmp.ne.s32.totalorder %s36, %s39
      %p48 = scmp.eq.s32.totalorder %s17, 3
      %p49 = por %p47, %p48
      %p50 = scmp.ne.s32.totalorder %s39, %s40
      %p51 = scmp.eq.s32.totalorder %s17, 0
      %p52 = por %p50, %p51
      %p53 = scmp.ne.s32.totalorder %s39, %s40
      %p54 = scmp.eq.s32.totalorder %s18, 3
      %p55 = por %p53, %p54
      %p57 = scmp.ne.s32.totalorder %s40, %s56
      %p58 = scmp.eq.s32.totalorder %s18, 0
      %p59 = por %p57, %p58
      %s60 = ssub.s32 %s19, %s31
      %s61 = ssub.s32 %s20, %s27
      %s62 = sor.u32 %s60, %s61
      %p63 = scmp.eq.s32.totalorder %s62, 0
      %s65 = sadd.s32 %s64, 1
      %s66 = scalar_select %p63, %s64, %s65
      %p69 = pneg %p63
      %p70 = scmp.eq.s32.totalorder %s12, 3
      %p71 = por %p69, %p70
      %p72 = scmp.ne.s32.totalorder %s64, %s67
      %p73 = scmp.eq.s32.totalorder %s12, 0
      %p74 = por %p72, %p73
      %p75 = scmp.ne.s32.totalorder %s64, %s67
      %p76 = scmp.eq.s32.totalorder %s17, 3
      %p77 = por %p75, %p76
      %p78 = scmp.ne.s32.totalorder %s67, %s68
      %p79 = scmp.eq.s32.totalorder %s17, 0
      %p80 = por %p78, %p79
      %p81 = scmp.ne.s32.totalorder %s67, %s68
      %p82 = scmp.eq.s32.totalorder %s18, 3
      %p83 = por %p81, %p82
      %p85 = scmp.ne.s32.totalorder %s68, %s84
      %p86 = scmp.eq.s32.totalorder %s18, 0
      %p87 = por %p85, %p86
      %s89 = sadd.s32 %s88, 1
      %p92 = scmp.eq.s32.totalorder %s12, 3
      %p93 = scmp.ne.s32.totalorder %s88, %s90
      %p94 = scmp.eq.s32.totalorder %s12, 0
      %p95 = por %p93, %p94
      %p96 = scmp.ne.s32.totalorder %s88, %s90
      %p97 = scmp.eq.s32.totalorder %s17, 3
      %p98 = por %p96, %p97
      %p99 = scmp.ne.s32.totalorder %s90, %s91
      %p100 = scmp.eq.s32.totalorder %s17, 0
      %p101 = por %p99, %p100
      %p102 = scmp.ne.s32.totalorder %s90, %s91
      %p103 = scmp.eq.s32.totalorder %s18, 3
      %p104 = por %p102, %p103
      %p106 = scmp.ne.s32.totalorder %s91, %s105
      %p107 = scmp.eq.s32.totalorder %s18, 0
      %p108 = por %p106, %p107
      %s109 = ssub.s32 %s19, %s31
      %s110 = ssub.s32 %s20, %s27
      %s111 = sor.u32 %s109, %s110
      %p112 = scmp.eq.s32.totalorder %s111, 0
      %s114 = sadd.s32 %s113, 1
      %s115 = scalar_select %p112, %s113, %s114
      %p118 = pneg %p112
      %p119 = scmp.eq.s32.totalorder %s12, 3
      %p120 = por %p118, %p119
      %p121 = scmp.ne.s32.totalorder %s113, %s116
      %p122 = scmp.eq.s32.totalorder %s12, 0
      %p123 = por %p121, %p122
      %p124 = scmp.ne.s32.totalorder %s113, %s116
      %p125 = scmp.eq.s32.totalorder %s17, 3
      %p126 = por %p124, %p125
      %p127 = scmp.ne.s32.totalorder %s116, %s117
      %p128 = scmp.eq.s32.totalorder %s17, 0
      %p129 = por %p127, %p128
      %p130 = scmp.ne.s32.totalorder %s116, %s117
      %p131 = scmp.eq.s32.totalorder %s18, 3
      %p132 = por %p130, %p131
      %p134 = scmp.ne.s32.totalorder %s117, %s133
      %p135 = scmp.eq.s32.totalorder %s18, 0
      %p136 = por %p134, %p135
      %p137 = scmp.le.s32.totalorder 1, %s12
      %p138 = scmp.lt.s32.totalorder %s12, 5
      %p139 = pnand %p137, %p138
      %p140 = pneg %p139
      // Predicated region
      $region9: #{tpu_custom_call.1} parent=5 // pred_check
        _
      $region10: #{tpu_custom_call.1} parent=5 // pred_check_branch
        %142 = sbr.rel (%p139) target = $region12
      $region11: #{tpu_custom_call.1} parent=5 // pred_region
        %s143 = ssub.s32 %s12, 1
        // Predicated region
        $region13: #{tpu_custom_call.1} parent=11 // pred_check
          %p144 = pneg %p101
        $region14: #{tpu_custom_call.1} parent=11 // pred_check_branch
          %146 = sbr.rel (%p144) target = $region16
        $region15: #{tpu_custom_call.1} parent=11 // pred_region
          _
        $region16: #{tpu_custom_call.1} parent=11 // pred_fallthru
          _
      $region12: #{tpu_custom_call.1} parent=5 // pred_fallthru
        _
      %p147 = scmp.lt.s32.totalorder %s12, 4
      // Predicated region
      $region17: #{tpu_custom_call.1} parent=5 // pred_check
        %p148 = pneg %p147
      $region18: #{tpu_custom_call.1} parent=5 // pred_check_branch
        %150 = sbr.rel (%p148) target = $region20
      $region19: #{tpu_custom_call.1} parent=5 // pred_region
        // Predicated region
        $region21: #{tpu_custom_call.1} parent=19 // pred_check
          %p151 = pneg %p46
        $region22: #{tpu_custom_call.1} parent=19 // pred_check_branch
          %153 = sbr.rel (%p151) target = $region24
        $region23: #{tpu_custom_call.1} parent=19 // pred_region
          %s154 = sand.u32 %s36, 1
          %s155 = scalar_lea.sflag [#allocation3], %s154
          %s156 = sand.u32 %s36, 1
          %s157 = smul.addr %s156, 4
          %s158 = scalar_lea.vmem [#allocation2], %s157
          %160 = vsyncadd %s155, 0
          %s161 = smul.addr %s19, 2
          %s162 = sadd.s32 %s20, %s161
          %s163 = smul.addr %s162, 4
          %s164 = scalar_lea.hbm %s0, %s163
          %s166 = sshll.u32 %s164, 4
          %s167 = int_to_ptr.hbm [resolvable:$true] %s166
          %s168 = sshll.u32 %s158, 4
          %s169 = int_to_ptr.vmem [resolvable:$true] %s168
          %171 = dma.hbm_to_vmem [thread:$0]  %s167, 64, %s169, %s155
        $region24: #{tpu_custom_call.1} parent=19 // pred_fallthru
          _
        // Predicated region
        $region25: #{tpu_custom_call.1} parent=19 // pred_check
          %p172 = pneg %p74
        $region26: #{tpu_custom_call.1} parent=19 // pred_check_branch
          %174 = sbr.rel (%p172) target = $region28
        $region27: #{tpu_custom_call.1} parent=19 // pred_region
          %p175 = scmp.lt.s32.totalorder %s19, 1
          %s176 = scalar_select %p175, %s19, 1
          %p177 = scmp.lt.s32.totalorder %s20, 1
          %s178 = scalar_select %p177, %s20, 1
          %s179 = smul.addr %s176, 2
          %s180 = sadd.s32 %s178, %s179
          %s181 = scalar_lea.vmem %s1, %s180
        $region28: #{tpu_custom_call.1} parent=19 // pred_fallthru
          _
      $region20: #{tpu_custom_call.1} parent=5 // pred_fallthru
        _
      %p182 = scmp.le.s32.totalorder 1, %s12
      %p183 = scmp.lt.s32.totalorder %s12, 5
      %p184 = pnand %p182, %p183
      %p185 = pneg %p184
      // Predicated region
      $region29: #{tpu_custom_call.1} parent=5 // pred_check
        _
      $region30: #{tpu_custom_call.1} parent=5 // pred_check_branch
        %187 = sbr.rel (%p184) target = $region32
      $region31: #{tpu_custom_call.1} parent=5 // pred_region
        %s188 = ssub.s32 %s12, 1
        %s189 = sand.u32 %s39, 1
        %s190 = scalar_lea.sflag [#allocation3], %s189
        %s191 = sand.u32 %s39, 1
        %s192 = smul.addr %s191, 4
        %s193 = scalar_lea.vmem [#allocation2], %s192
        // Predicated region
        $region33: #{tpu_custom_call.1} parent=31 // pred_check
          %p194 = pneg %p52
        $region34: #{tpu_custom_call.1} parent=31 // pred_check_branch
          %196 = sbr.rel (%p194) target = $region36
        $region35: #{tpu_custom_call.1} parent=31 // pred_region
          %198 = dma.done %s190, 64
        $region36: #{tpu_custom_call.1} parent=31 // pred_fallthru
          _
        %s199 = sand.u32 %s39, 1
        %s200 = scalar_lea.sflag [#allocation3], %s199
        %s201 = sand.u32 %s39, 1
        %s202 = smul.addr %s201, 4
        %s203 = scalar_lea.vmem [#allocation2], %s202
        %p204 = pneg %p52
        %p205 = pneg %p49
        %p206 = scmp.lt.s32.totalorder %s21, 1
        %s207 = scalar_select %p206, %s21, 1
        %p208 = scmp.lt.s32.totalorder %s22, 1
        %s209 = scalar_select %p208, %s22, 1
        %s210 = smul.addr %s207, 2
        %s211 = sadd.s32 %s209, %s210
        %s212 = scalar_lea.vmem %s1, %s211
        %p213 = pneg %p80
        %p214 = pneg %p77
        %p215 = pneg %p101
        %p216 = pneg %p98
        %p217 = pneg %p129
        %p218 = pneg %p126
        %p219 = scmp.lt.s32.totalorder %s21, 1
        %s220 = scalar_select %p219, %s21, 1
        %p221 = scmp.lt.s32.totalorder %s22, 1
        %s222 = scalar_select %p221, %s22, 1
        %s223 = smul.addr %s220, 2
        %s224 = sadd.s32 %s222, %s223
        %s225 = scalar_lea.vmem %s3, %s224
        %p226 = scmp.lt.s32.totalorder %s21, 1
        %s227 = scalar_select %p226, %s21, 1
        %p228 = scmp.lt.s32.totalorder %s22, 1
        %s229 = scalar_select %p228, %s22, 1
        %s230 = smul.addr %s227, 2
        %s231 = sadd.s32 %s229, %s230
        %s232 = scalar_lea.vmem %s1, %s231
        %p233 = scmp.lt.s32.totalorder %s21, 1
        %s234 = scalar_select %p233, %s21, 1
        %p235 = scmp.lt.s32.totalorder %s22, 1
        %s236 = scalar_select %p235, %s22, 1
        %s237 = smul.addr %s234, 2
        %s238 = sadd.s32 %s236, %s237
        %s239 = scalar_lea.vmem %s3, %s238
        %v240 = vld [vmem:[%s193] sm:$0xf]
        %v241 = vld [vmem:[%s232] sm:$0x1]
        %vm242 = vcmask 1043456
        %v243 = vsel %vm242, %v240, -inf
        %v244 = vrot.slane %v243, 4
        %v245 = vmax.f32 %v243, %v244
        %v246 = vrot.slane %v245, 2
        %v247 = vmax.f32 %v245, %v246
        %v248 = vrot.slane %v247, 1
        %v249 = vmax.f32 %v247, %v248
        %v250 = vsub.f32 %v240, %v249
        %v251 = vmul.f32 %v250, 1.442695
        %v252 = vpow.pop %v251
        %v253 = vsel %vm242, %v252, 0.0
        %v254 = vrot.slane %v253, 4
        %v255 = vadd.f32 %v253, %v254
        %v256 = vrot.slane %v255, 2
        %v257 = vadd.f32 %v255, %v256
        %v258 = vrot.slane %v257, 1
        %v259 = vadd.f32 %v257, %v258
        %v260 = vlaneseq
        %v261 = vshrl.u32 %v260, 7
        %v262 = vperm.slane %v241, 0
        %vm263 = vcmp.eq.s32.totalorder %v261, %v262
        %v264 = vsel %vm263, 1, 0
        %v265 = vcvt.s32.f32 %v264
        %v266 = vmul.f32 %v265, %v250
        %v267 = vsel %vm242, %v266, 0.0
        %v268 = vrot.slane %v267, 4
        %v269 = vadd.f32 %v267, %v268
        %v270 = vrot.slane %v269, 2
        %v271 = vadd.f32 %v269, %v270
        %v272 = vrot.slane %v271, 1
        %v273 = vadd.f32 %v271, %v272
        %v274 = vmul.f32 %v265, %v252
        %v275 = vsel %vm242, %v274, 0.0
        %v276 = vrot.slane %v275, 4
        %v277 = vadd.f32 %v275, %v276
        %v278 = vrot.slane %v277, 2
        %v279 = vadd.f32 %v277, %v278
        %v280 = vrot.slane %v279, 1
        %v281 = vadd.f32 %v279, %v280
        %v282 = vlog2.pop %v259
        %v283 = vmul.f32 %v282, 0.6931472
        %v284 = vsub.f32 %v273, %v283
        %v285 = vrcp.pop %v259
        %v286 = vmul.f32 %v281, %v285
        %v287 = vld [vmem:[%s2] sm:$0xf]
        %289 = vset.pattern.permute.xlu0 0
        %290 = vperm.xlu0 %289, %v287
        %v291 = vpop.permute.xlu0 %290
        %v293 = vmul.f32 %v265, %v291
        %v294 = vsel %vm242, %v293, 0.0
        %v295 = vrot.slane %v294, 4
        %v296 = vadd.f32 %v294, %v295
        %v297 = vrot.slane %v296, 2
        %v298 = vadd.f32 %v296, %v297
        %v299 = vrot.slane %v298, 1
        %v300 = vadd.f32 %v298, %v299
        %v301 = vmul.f32 %v284, %v300
        %v302 = vsub.f32 1.0, %v286
        %v303 = vmul.f32 %v302, %v302
        %v304 = vmul.f32 %v303, %v301
        %v305 = vsub.f32 0.0, %v304
        %306 = vadd.xlane.f32.xlu0 %v305
        %v307 = vpop.xlane.xlu0 %306
        %vm308 = vcmask 0
        %309 = vst.msk [vmem:[%s239] sm:$0x1] %vm308, %v307
        %p310 = scmp.lt.s32.totalorder %s21, 1
        %s311 = scalar_select %p310, %s21, 1
        %p312 = scmp.lt.s32.totalorder %s22, 1
        %s313 = scalar_select %p312, %s22, 1
        %s314 = smul.addr %s311, 2
        %s315 = sadd.s32 %s313, %s314
        %s316 = scalar_lea.vmem %s3, %s315
        // Predicated region
        $region37: #{tpu_custom_call.1} parent=31 // pred_check
          %p317 = pneg %p126
        $region38: #{tpu_custom_call.1} parent=31 // pred_check_branch
          %319 = sbr.rel (%p317) target = $region40
        $region39: #{tpu_custom_call.1} parent=31 // pred_region
          _
        $region40: #{tpu_custom_call.1} parent=31 // pred_fallthru
          _
      $region32: #{tpu_custom_call.1} parent=5 // pred_fallthru
        _
      %p320 = scmp.le.s32.totalorder 2, %s12
      // Predicated region
      $region41: #{tpu_custom_call.1} parent=5 // pred_check
        %p321 = pneg %p320
      $region42: #{tpu_custom_call.1} parent=5 // pred_check_branch
        %323 = sbr.rel (%p321) target = $region44
      $region43: #{tpu_custom_call.1} parent=5 // pred_region
        %s324 = ssub.s32 %s12, 2
        // Predicated region
        $region45: #{tpu_custom_call.1} parent=43 // pred_check
          %p325 = pneg %p132
        $region46: #{tpu_custom_call.1} parent=43 // pred_check_branch
          %327 = sbr.rel (%p325) target = $region48
        $region47: #{tpu_custom_call.1} parent=43 // pred_region
          %p328 = scmp.lt.s32.totalorder %s23, 1
          %s329 = scalar_select %p328, %s23, 1
          %p330 = scmp.lt.s32.totalorder %s24, 1
          %s331 = scalar_select %p330, %s24, 1
          %s332 = smul.addr %s329, 2
          %s333 = sadd.s32 %s331, %s332
          %s334 = scalar_lea.vmem %s3, %s333
        $region48: #{tpu_custom_call.1} parent=43 // pred_fallthru
          _
      $region44: #{tpu_custom_call.1} parent=5 // pred_fallthru
        _
    $region6: #{tpu_custom_call.1} parent=1 // loop_footer
      %s16 = sadd.s32 1, %s12
    $region7: #{tpu_custom_call.1} parent=1 // loop_footer_branch
      %11 = sbr.rel target = $region3
    $region8: #{tpu_custom_call.1} parent=1 // loop_exit
      _
    %335 = vsyncpa [#allocation3], 1
    %s336 = scalar_lea.sflag [#allocation3], 1
    %337 = vsyncpa %s336, 1

</llo_original>
